<compile_context>
chip_gen: v6e
topology: v6e:2x2x1
jax: 0.10.0
libtpu: 0.0.40
codegen_flags: <defaults>
</compile_context>

<pallas_src>
import math

import jax
import jax.numpy as jnp
from jax import lax
from jax.experimental import pallas as pl
from jax.experimental.pallas import tpu as pltpu


def _make_kernel(bn, xb_first):
    """Build the per-grid-step kernel.

    Refs (all blocks):
      x_ref:    (bn, C_in, tl)
      bdiag_ref:(1, tl, tl)        block-diagonal adjacency for this t-tile (VMEM-resident across batch)
      w_ref:    (C_out, C_in)      1x1-conv weight (constant index_map -> fetched once)
      bias_ref: (1, C_out, tl)  if xb_first  (bias already contracted with bdiag column-sums)
                (C_out, 1)      otherwise
      o_ref:    (bn, C_out, tl)
    """
    if xb_first:
        def kernel(x_ref, bdiag_ref, w_ref, bias_ref, o_ref):
            bmat = bdiag_ref[0]                      # (tl, tl)
            w = w_ref[...]                           # (C_out, C_in)
            brow = bias_ref[0]                       # (C_out, tl), f32

            def body(b, carry):
                # Cheap-rows-first ordering: the big tl x tl matmul runs with C_in rows.
                t = jnp.dot(x_ref[b], bmat, preferred_element_type=jnp.float32)   # (C_in, tl)
                o = jnp.dot(w, t.astype(w.dtype),
                            preferred_element_type=jnp.float32) + brow            # (C_out, tl)
                o_ref[b] = o.astype(o_ref.dtype)
                return carry

            lax.fori_loop(0, bn, body, 0, unroll=True)
        return kernel
    else:
        def kernel(x_ref, bdiag_ref, w_ref, bias_ref, o_ref):
            bmat = bdiag_ref[0]                      # (tl, tl)
            w = w_ref[...]                           # (C_out, C_in)
            bvec = bias_ref[...]                     # (C_out, 1), f32

            def body(b, carry):
                y = jnp.dot(w, x_ref[b], preferred_element_type=jnp.float32) + bvec   # (C_out, tl)
                o = jnp.dot(y.astype(bmat.dtype), bmat,
                            preferred_element_type=jnp.float32)                        # (C_out, tl)
                o_ref[b] = o.astype(o_ref.dtype)
                return carry

            lax.fori_loop(0, bn, body, 0, unroll=True)
        return kernel


def _default_max_lanes():
    """MXU-width target for the lane dimension: 128 on v5e (4x128 MXU), 256 on v6e/v7x (256-wide MXU)."""
    try:
        kind = jax.devices()[0].device_kind.lower()
    except Exception:
        return 256
    if "v5 lite" in kind or "v5e" in kind or "v5lite" in kind:
        return 128
    return 256


def _pick_tiling(T, V, max_lanes):
    """Choose (t_tile, Vp, Tp).

    Vp >= V : zero-padded node count (power of two <= 128, else multiple of 128) so tl aligns to lanes.
    t_tile  : time steps per block with tl = t_tile*Vp a multiple of 128 and <= max_lanes (MXU width),
              never over-padding T by more than the alignment granule.
    Tp >= T : zero-padded sequence length, multiple of t_tile.
    """
    if V <= 128:
        Vp = max(1, 1 << (V - 1).bit_length())       # next power of two >= V (divides 128)
    else:
        Vp = ((V + 127) // 128) * 128
    if Vp >= max_lanes:
        t_tile = 1                                    # dense per-time-step matmul; no block-diag waste
    else:
        t0 = 128 // math.gcd(128, Vp)                 # smallest lane-aligned t_tile
        t_tile = max(t0, (max_lanes // (t0 * Vp)) * t0)
        t_tile = min(t_tile, ((T + t0 - 1) // t0) * t0)
    Tp = ((T + t_tile - 1) // t_tile) * t_tile
    return t_tile, Vp, Tp


def conv_temporal_graphical(x, A, weight, bias, *, compute_dtype=None,
                            max_lanes=None, batch_block=8):
    """Forward of ConvTemporalGraphical with default temporal conv params.

    x: (N, C_in, T, V); A: (K, V, V) with K == T (as required by the module's einsum);
    weight: (C_out, C_in) (squeezed 1x1 Conv2d weight); bias: (C_out,).
    compute_dtype: optional streaming dtype for the MXU operands (e.g. jnp.bfloat16); accumulation
    is always f32 and the output keeps x.dtype.
    Returns (out, A) with out: (N, C_out, T, V).
    """
    N, C_in, T, V = x.shape
    K, Va, Vw = A.shape
    assert K == T and Va == V and Vw == V, "A must be (T, V, V) for einsum('nctv,tvw->nctw')"
    C_out = weight.shape[0]
    out_dtype = x.dtype
    A_ret = A

    if max_lanes is None:
        max_lanes = _default_max_lanes()
    t_tile, Vp, Tp = _pick_tiling(T, V, max_lanes)
    n_t = Tp // t_tile
    tl = t_tile * Vp

    # Batch blocking: largest divisor of N up to `batch_block`.
    bn = 1
    for d in range(min(batch_block, N), 0, -1):
        if N % d == 0:
            bn = d
            break
    n_b = N // bn

    # Zero-padding (correct because padded x columns are zero and padded A rows/cols are zero:
    # neither the conv bias on padded nodes nor padded time steps leak into the kept outputs).
    if Tp != T or Vp != V:
        x = jnp.pad(x, ((0, 0), (0, 0), (0, Tp - T), (0, Vp - V)))
        A = jnp.pad(A, ((0, Tp - T), (0, Vp - V), (0, Vp - V)))

    op_dtype = jnp.dtype(compute_dtype) if compute_dtype is not None else jnp.dtype(x.dtype)

    # Lane-dense operands (free HBM-layout reshape) in the streaming dtype.
    x_flat = x.reshape(N, C_in, Tp * Vp).astype(op_dtype)
    w = weight.astype(op_dtype)

    # Block-diagonal adjacency per t-tile:
    #   bdiag[i, (t, v), (t', w)] = A[i*t_tile + t, v, w] * delta(t, t')
    A_t = A.reshape(n_t, t_tile, Vp, Vp)
    eye_t = jnp.eye(t_tile, dtype=A.dtype)
    bdiag = jnp.einsum('ntvw,ts->ntvsw', A_t, eye_t).reshape(n_t, tl, tl).astype(op_dtype)

    xb_first = C_in <= C_out
    if xb_first:
        # Bias folded through the graph contraction: (b 1^T) @ B = b ⊗ colsum(B).
        colsum = bdiag.astype(jnp.float32).sum(axis=1)                           # (n_t, tl)
        bias_in = bias.astype(jnp.float32)[None, :, None] * colsum[:, None, :]   # (n_t, C_out, tl)
        bias_spec = pl.BlockSpec((1, C_out, tl), lambda t, n: (t, 0, 0))
    else:
        bias_in = bias.astype(jnp.float32).reshape(C_out, 1)
        bias_spec = pl.BlockSpec((C_out, 1), lambda t, n: (0, 0))

    kernel = _make_kernel(bn, xb_first)

    # VMEM budget: blocks are double-buffered by the pipeline; assert we stay far under the
    # physical floor (64 MiB on v7x) and raise the scoped limit accordingly.
    itm_op = jnp.dtype(op_dtype).itemsize
    itm_out = jnp.dtype(out_dtype).itemsize
    blk_bytes = (bn * C_in * tl + tl * tl + C_out * C_in) * itm_op + bn * C_out * tl * itm_out
    blk_bytes += C_out * tl * 4 if xb_first else C_out * 4
    est = 2 * blk_bytes
    assert est <= 48 * 1024 * 1024, "per-step VMEM blocks too large; lower max_lanes/batch_block"
    vmem_limit = int(min(64 * 1024 * 1024, max(32 * 1024 * 1024, 4 * est)))

    out_flat = pl.pallas_call(
        kernel,
        out_shape=jax.ShapeDtypeStruct((N, C_out, Tp * Vp), out_dtype),
        grid_spec=pltpu.PrefetchScalarGridSpec(
            num_scalar_prefetch=0,
            # Batch innermost: bdiag / bias_in block indices are constant across the inner sweep,
            # so Pallas keeps them VMEM-resident instead of re-DMA'ing them per batch block.
            grid=(n_t, n_b),
            in_specs=[
                pl.BlockSpec((bn, C_in, tl), lambda t, n: (n, 0, t)),
                pl.BlockSpec((1, tl, tl),    lambda t, n: (t, 0, 0)),
                pl.BlockSpec((C_out, C_in),  lambda t, n: (0, 0)),
                bias_spec,
            ],
            out_specs=pl.BlockSpec((bn, C_out, tl), lambda t, n: (n, 0, t)),
        ),
        compiler_params=pltpu.CompilerParams(
            dimension_semantics=("parallel", "parallel"),
            vmem_limit_bytes=vmem_limit),
    )(x_flat, bdiag, w, bias_in)

    out = out_flat.reshape(N, C_out, Tp, Vp)[:, :, :T, :V]
    return out, A_ret


if __name__ == "__main__":
    key = jax.random.PRNGKey(0)

    def ref_forward(x, A, w, b):
        y = jnp.einsum('oi,nitv->notv', w, x) + b[None, :, None, None]
        return jnp.einsum('nctv,tvw->nctw', y, A)

    def run_case(name, N, C_in, C_out, T, V, case_key, compute_dtype=None, atol=1e-4, rtol=1e-4):
        k1, k2, k3, k4 = jax.random.split(case_key, 4)
        x = jax.random.normal(k1, (N, C_in, T, V), jnp.float32)
        A = jax.random.normal(k2, (T, V, V), jnp.float32)
        w = jax.random.normal(k3, (C_out, C_in), jnp.float32) * 0.1
        b = jax.random.normal(k4, (C_out,), jnp.float32) * 0.1
        out, A_out = conv_temporal_graphical(x, A, w, b, compute_dtype=compute_dtype)
        out = jax.block_until_ready(out)
        ref = ref_forward(x, A, w, b)
        assert out.shape == (N, C_out, T, V), name
        assert jnp.allclose(out, ref, atol=atol, rtol=rtol), f"{name}: mismatch vs reference"
        assert jnp.array_equal(A_out, A), name

    keys = jax.random.split(key, 4)
    # Channel expansion (C_in < C_out): exercises the x@B-first ordering with folded bias.
    run_case("f32_expand", N=2, C_in=4, C_out=8, T=16, V=16, case_key=keys[0])
    # Channel reduction (C_in > C_out): exercises the Wx+b-first ordering.
    run_case("f32_reduce", N=2, C_in=8, C_out=4, T=16, V=16, case_key=keys[1])
    # Unaligned skeleton-style graph: exercises V-padding (18 -> 32) and T-padding (12 -> 16).
    run_case("f32_pad", N=3, C_in=4, C_out=8, T=12, V=18, case_key=keys[2])
    # bf16 operand streaming with f32 accumulation (looser tolerance by design).
    run_case("bf16_expand", N=2, C_in=4, C_out=8, T=16, V=16, case_key=keys[3],
             compute_dtype=jnp.bfloat16, atol=5e-2, rtol=5e-2)

    print("KERNEL_OK")
</pallas_src>

<mosaic_0001>
module attributes {stable_mosaic.version = 11 : i64} {
  func.func @kernel(%arg0: i32, %arg1: i32, %arg2: memref<2x4x256xf32, #tpu.memory_space<vmem>>, %arg3: memref<1x256x256xf32, #tpu.memory_space<vmem>>, %arg4: memref<8x4xf32, #tpu.memory_space<vmem>>, %arg5: memref<1x8x256xf32, #tpu.memory_space<vmem>>, %arg6: memref<2x8x256xf32, #tpu.memory_space<vmem>>) attributes {dimension_semantics = [#tpu.dimension_semantics<parallel>, #tpu.dimension_semantics<parallel>], iteration_bounds = array<i64: 1, 1>, scalar_prefetch = 0 : i64, scratch_operands = 0 : i64, tpu.core_type = #tpu.core_type<tc>, window_params = [{transform_indices = @transform_0, window_bounds = array<i64: 2, 4, 256>}, {transform_indices = @transform_1, window_bounds = array<i64: 1, 256, 256>}, {pipeline_mode = #tpu.pipeline_mode<synchronous>, transform_indices = @transform_2, window_bounds = array<i64: 8, 4>}, {transform_indices = @transform_3, window_bounds = array<i64: 1, 8, 256>}, {transform_indices = @transform_4, window_bounds = array<i64: 2, 8, 256>}]} {
    %c0 = arith.constant 0 : index
    %c0_0 = arith.constant 0 : index
    %c0_1 = arith.constant 0 : index
    %0 = vector.load %arg3[%c0, %c0_0, %c0_1] : memref<1x256x256xf32, #tpu.memory_space<vmem>>, vector<1x256x256xf32>
    %1 = vector.shape_cast %0 : vector<1x256x256xf32> to vector<256x256xf32>
    %c0_2 = arith.constant 0 : index
    %c0_3 = arith.constant 0 : index
    %2 = vector.load %arg4[%c0_2, %c0_3] : memref<8x4xf32, #tpu.memory_space<vmem>>, vector<8x4xf32>
    %c0_4 = arith.constant 0 : index
    %c0_5 = arith.constant 0 : index
    %c0_6 = arith.constant 0 : index
    %3 = vector.load %arg5[%c0_4, %c0_5, %c0_6] : memref<1x8x256xf32, #tpu.memory_space<vmem>>, vector<1x8x256xf32>
    %4 = vector.shape_cast %3 : vector<1x8x256xf32> to vector<8x256xf32>
    %c0_i32 = arith.constant 0 : i32
    %5 = arith.index_cast %c0_i32 : i32 to index
    %c0_7 = arith.constant 0 : index
    %c0_8 = arith.constant 0 : index
    %6 = vector.load %arg2[%5, %c0_7, %c0_8] : memref<2x4x256xf32, #tpu.memory_space<vmem>>, vector<1x4x256xf32>
    %7 = vector.shape_cast %6 : vector<1x4x256xf32> to vector<4x256xf32>
    %cst = arith.constant dense<0.000000e+00> : vector<4x256xf32>
    %8 = tpu.matmul %7, %1, %cst {dimension_numbers = #tpu.dot_dimension_numbers<[1], [0], [0], [1], [0, 0, 1, 1], [], []>} : vector<4x256xf32>, vector<256x256xf32>, vector<4x256xf32> -> vector<4x256xf32>
    %cst_9 = arith.constant dense<0.000000e+00> : vector<8x256xf32>
    %9 = tpu.matmul %2, %8, %cst_9 {dimension_numbers = #tpu.dot_dimension_numbers<[1], [0], [0], [1], [0, 0, 1, 1], [], []>} : vector<8x4xf32>, vector<4x256xf32>, vector<8x256xf32> -> vector<8x256xf32>
    %10 = arith.addf %9, %4 : vector<8x256xf32>
    %11 = arith.index_cast %c0_i32 : i32 to index
    %c0_10 = arith.constant 0 : index
    %c0_11 = arith.constant 0 : index
    %12 = vector.load %arg6[%11, %c0_10, %c0_11] : memref<2x8x256xf32, #tpu.memory_space<vmem>>, vector<1x8x256xf32>
    %13 = vector.shape_cast %12 : vector<1x8x256xf32> to vector<8x256xf32>
    %14 = vector.shape_cast %10 : vector<8x256xf32> to vector<1x8x256xf32>
    tpu.vector_store %arg6[%11, %c0_10, %c0_11], %14 {strides = array<i32>} : memref<2x8x256xf32, #tpu.memory_space<vmem>>, vector<1x8x256xf32>,
    %c1_i32 = arith.constant 1 : i32
    %15 = arith.index_cast %c1_i32 : i32 to index
    %c0_12 = arith.constant 0 : index
    %c0_13 = arith.constant 0 : index
    %16 = vector.load %arg2[%15, %c0_12, %c0_13] : memref<2x4x256xf32, #tpu.memory_space<vmem>>, vector<1x4x256xf32>
    %17 = vector.shape_cast %16 : vector<1x4x256xf32> to vector<4x256xf32>
    %cst_14 = arith.constant dense<0.000000e+00> : vector<4x256xf32>
    %18 = tpu.matmul %17, %1, %cst_14 {dimension_numbers = #tpu.dot_dimension_numbers<[1], [0], [0], [1], [0, 0, 1, 1], [], []>} : vector<4x256xf32>, vector<256x256xf32>, vector<4x256xf32> -> vector<4x256xf32>
    %cst_15 = arith.constant dense<0.000000e+00> : vector<8x256xf32>
    %19 = tpu.matmul %2, %18, %cst_15 {dimension_numbers = #tpu.dot_dimension_numbers<[1], [0], [0], [1], [0, 0, 1, 1], [], []>} : vector<8x4xf32>, vector<4x256xf32>, vector<8x256xf32> -> vector<8x256xf32>
    %20 = arith.addf %19, %4 : vector<8x256xf32>
    %21 = arith.index_cast %c1_i32 : i32 to index
    %c0_16 = arith.constant 0 : index
    %c0_17 = arith.constant 0 : index
    %22 = vector.load %arg6[%21, %c0_16, %c0_17] : memref<2x8x256xf32, #tpu.memory_space<vmem>>, vector<1x8x256xf32>
    %23 = vector.shape_cast %22 : vector<1x8x256xf32> to vector<8x256xf32>
    %24 = vector.shape_cast %20 : vector<8x256xf32> to vector<1x8x256xf32>
    tpu.vector_store %arg6[%21, %c0_16, %c0_17], %24 {strides = array<i32>} : memref<2x8x256xf32, #tpu.memory_space<vmem>>, vector<1x8x256xf32>,
    %c2_i32 = arith.constant 2 : i32
    return
  }
  func.func @transform_0(%arg0: i32, %arg1: i32) -> (i32, i32, i32) {
    %c0_i32 = arith.constant 0 : i32
    %c0_i32_0 = arith.constant 0 : i32
    return %arg1, %c0_i32, %arg0 : i32, i32, i32
  }
  func.func @transform_1(%arg0: i32, %arg1: i32) -> (i32, i32, i32) {
    %c0_i32 = arith.constant 0 : i32
    %c0_i32_0 = arith.constant 0 : i32
    %c0_i32_1 = arith.constant 0 : i32
    return %arg0, %c0_i32, %c0_i32_0 : i32, i32, i32
  }
  func.func @transform_2(%arg0: i32, %arg1: i32) -> (i32, i32) {
    %c0_i32 = arith.constant 0 : i32
    %c0_i32_0 = arith.constant 0 : i32
    %c0_i32_1 = arith.constant 0 : i32
    return %c0_i32, %c0_i32_0 : i32, i32
  }
  func.func @transform_3(%arg0: i32, %arg1: i32) -> (i32, i32, i32) {
    %c0_i32 = arith.constant 0 : i32
    %c0_i32_0 = arith.constant 0 : i32
    %c0_i32_1 = arith.constant 0 : i32
    return %arg0, %c0_i32, %c0_i32_0 : i32, i32, i32
  }
  func.func @transform_4(%arg0: i32, %arg1: i32) -> (i32, i32, i32) {
    %c0_i32 = arith.constant 0 : i32
    %c0_i32_0 = arith.constant 0 : i32
    return %arg1, %c0_i32, %arg0 : i32, i32, i32
  }
}

</mosaic_0001>

<llo_original>
// kernel: tpu_custom_call.1
$region0: #{tpu_custom_call.1}
  #allocation0 [shape = 'u32[]', space=smem, size = 0x4, offset = 0x4, fixed_abs, tag = 'smem constant byte address 0x4 - core index']
  #allocation1 [shape = 'u32[144,128]{1,0:T(1,128)}', space=vmem, size = 0x12000, scoped, tag = 'internal scratch']
  %s0 = inlined_call_operand.hbm [shape: f32[2,4,256], index: 0, kind: input, shape index: {}]
  %s1 = inlined_call_operand.hbm [shape: f32[1,256,256], index: 1, kind: input, shape index: {}]
  %s2 = inlined_call_operand.vmem [shape: f32[8,4], index: 2, kind: input, shape index: {}]
  %s3 = inlined_call_operand.vmem [shape: f32[1,8,256], index: 3, kind: input, shape index: {}]
  %s4 = inlined_call_operand.hbm [shape: f32[2,8,256], index: 4, kind: output, shape index: {}]
  %s5 = sld [smem:[#allocation0]]
  $region34: #{tpu_custom_call.1} parent=0
    _
  %s7 = ssub.s32 1, %s5
  %s8 = scalar_select 0, %s7, %s5
  $region1: #{tpu_custom_call.1} parent=0
    #allocation2 [shape = 'u8[8192]{0}', space=vmem, size = 0x2000, scoped, tag = 'input window, operand 0, single buffered']
    #allocation3 [shape = 's32[1]{0}', space=sflag, size = 0x4, scoped, tag = 'scoped memory for tpu_custom_call.1']
    #allocation4 [shape = 's32[1]{0}', space=sflag, size = 0x4, scoped, tag = 'scoped memory for tpu_custom_call.1']
    #allocation5 [shape = 'u8[262144]{0}', space=vmem, size = 0x40000, scoped, tag = 'input window, operand 1, single buffered']
    #allocation6 [shape = 's32[1]{0}', space=sflag, size = 0x4, scoped, tag = 'scoped memory for tpu_custom_call.1']
    #allocation7 [shape = 'u8[16384]{0}', space=vmem, size = 0x4000, scoped, tag = 'output window, operand 0, single buffered']
    %9 = vsyncpa [#allocation3], 0
    %10 = vsyncpa [#allocation6], 0
    %11 = vsyncpa [#allocation4], 0
    // Predicated region
    $region2: #{tpu_custom_call.1} parent=1 // pred_check
      _
    $region3: #{tpu_custom_call.1} parent=1 // pred_check_branch
      %13 = sbr.rel (0) target = $region5
    $region4: #{tpu_custom_call.1} parent=1 // pred_region
      %s15 = ssub.s32 256, 256
      %16 = vsyncadd [#allocation3], %s15
      %s17 = sshll.u32 [#allocation2], 4
      %s18 = int_to_ptr.vmem [resolvable:$true] %s17
      %23 = dma.hbm_to_vmem [thread:$0]  %s0, 256, %s18, [#allocation3], 128, 128, 8
    $region5: #{tpu_custom_call.1} parent=1 // pred_fallthru
      _
    // Predicated region
    $region6: #{tpu_custom_call.1} parent=1 // pred_check
      _
    $region7: #{tpu_custom_call.1} parent=1 // pred_check_branch
      %25 = sbr.rel (0) target = $region9
    $region8: #{tpu_custom_call.1} parent=1 // pred_region
      %s27 = ssub.s32 8192, 8192
      %28 = vsyncadd [#allocation6], %s27
      %s29 = sshll.u32 [#allocation5], 4
      %s30 = int_to_ptr.vmem [resolvable:$true] %s29
      %35 = dma.hbm_to_vmem [thread:$0]  %s1, 8192, %s30, [#allocation6], 256, 256, 16
    $region9: #{tpu_custom_call.1} parent=1 // pred_fallthru
      _
    // Predicated region
    $region10: #{tpu_custom_call.1} parent=1 // pred_check
      _
    $region11: #{tpu_custom_call.1} parent=1 // pred_check_branch
      %37 = sbr.rel (0) target = $region13
    $region12: #{tpu_custom_call.1} parent=1 // pred_region
      _
    $region13: #{tpu_custom_call.1} parent=1 // pred_fallthru
      _
    // Predicated region
    $region14: #{tpu_custom_call.1} parent=1 // pred_check
      _
    $region15: #{tpu_custom_call.1} parent=1 // pred_check_branch
      %39 = sbr.rel (0) target = $region17
    $region16: #{tpu_custom_call.1} parent=1 // pred_region
      _
    $region17: #{tpu_custom_call.1} parent=1 // pred_fallthru
      _
    // Predicated region
    $region18: #{tpu_custom_call.1} parent=1 // pred_check
      _
    $region19: #{tpu_custom_call.1} parent=1 // pred_check_branch
      %41 = sbr.rel (0) target = $region21
    $region20: #{tpu_custom_call.1} parent=1 // pred_region
      %42 = dma.done [#allocation3], 256
    $region21: #{tpu_custom_call.1} parent=1 // pred_fallthru
      _
    // Predicated region
    $region22: #{tpu_custom_call.1} parent=1 // pred_check
      _
    $region23: #{tpu_custom_call.1} parent=1 // pred_check_branch
      %44 = sbr.rel (0) target = $region25
    $region24: #{tpu_custom_call.1} parent=1 // pred_region
      %45 = dma.done [#allocation6], 8192
    $region25: #{tpu_custom_call.1} parent=1 // pred_fallthru
      _
    %v46 = vld [vmem:[#allocation5] sm:$0xff]
    %v47 = vld [vmem:[#allocation5 + $0x8] sm:$0xff]
    %v48 = vld [vmem:[#allocation5 + $0x10] sm:$0xff]
    %v49 = vld [vmem:[#allocation5 + $0x18] sm:$0xff]
    %v50 = vld [vmem:[#allocation5 + $0x20] sm:$0xff]
    %v51 = vld [vmem:[#allocation5 + $0x28] sm:$0xff]
    %v52 = vld [vmem:[#allocation5 + $0x30] sm:$0xff]
    %v53 = vld [vmem:[#allocation5 + $0x38] sm:$0xff]
    %v54 = vld [vmem:[#allocation5 + $0x40] sm:$0xff]
    %v55 = vld [vmem:[#allocation5 + $0x48] sm:$0xff]
    %v56 = vld [vmem:[#allocation5 + $0x50] sm:$0xff]
    %v57 = vld [vmem:[#allocation5 + $0x58] sm:$0xff]
    %v58 = vld [vmem:[#allocation5 + $0x60] sm:$0xff]
    %v59 = vld [vmem:[#allocation5 + $0x68] sm:$0xff]
    %v60 = vld [vmem:[#allocation5 + $0x70] sm:$0xff]
    %v61 = vld [vmem:[#allocation5 + $0x78] sm:$0xff]
    %v62 = vld [vmem:[#allocation5 + $0x80] sm:$0xff]
    %v63 = vld [vmem:[#allocation5 + $0x88] sm:$0xff]
    %v64 = vld [vmem:[#allocation5 + $0x90] sm:$0xff]
    %v65 = vld [vmem:[#allocation5 + $0x98] sm:$0xff]
    %v66 = vld [vmem:[#allocation5 + $0xa0] sm:$0xff]
    %v67 = vld [vmem:[#allocation5 + $0xa8] sm:$0xff]
    %v68 = vld [vmem:[#allocation5 + $0xb0] sm:$0xff]
    %v69 = vld [vmem:[#allocation5 + $0xb8] sm:$0xff]
    %v70 = vld [vmem:[#allocation5 + $0xc0] sm:$0xff]
    %v71 = vld [vmem:[#allocation5 + $0xc8] sm:$0xff]
    %v72 = vld [vmem:[#allocation5 + $0xd0] sm:$0xff]
    %v73 = vld [vmem:[#allocation5 + $0xd8] sm:$0xff]
    %v74 = vld [vmem:[#allocation5 + $0xe0] sm:$0xff]
    %v75 = vld [vmem:[#allocation5 + $0xe8] sm:$0xff]
    %v76 = vld [vmem:[#allocation5 + $0xf0] sm:$0xff]
    %v77 = vld [vmem:[#allocation5 + $0xf8] sm:$0xff]
    %v78 = vld [vmem:[#allocation5 + $0x100] sm:$0xff]
    %v79 = vld [vmem:[#allocation5 + $0x108] sm:$0xff]
    %v80 = vld [vmem:[#allocation5 + $0x110] sm:$0xff]
    %v81 = vld [vmem:[#allocation5 + $0x118] sm:$0xff]
    %v82 = vld [vmem:[#allocation5 + $0x120] sm:$0xff]
    %v83 = vld [vmem:[#allocation5 + $0x128] sm:$0xff]
    %v84 = vld [vmem:[#allocation5 + $0x130] sm:$0xff]
    %v85 = vld [vmem:[#allocation5 + $0x138] sm:$0xff]
    %v86 = vld [vmem:[#allocation5 + $0x140] sm:$0xff]
    %v87 = vld [vmem:[#allocation5 + $0x148] sm:$0xff]
    %v88 = vld [vmem:[#allocation5 + $0x150] sm:$0xff]
    %v89 = vld [vmem:[#allocation5 + $0x158] sm:$0xff]
    %v90 = vld [vmem:[#allocation5 + $0x160] sm:$0xff]
    %v91 = vld [vmem:[#allocation5 + $0x168] sm:$0xff]
    %v92 = vld [vmem:[#allocation5 + $0x170] sm:$0xff]
    %v93 = vld [vmem:[#allocation5 + $0x178] sm:$0xff]
    %v94 = vld [vmem:[#allocation5 + $0x180] sm:$0xff]
    %v95 = vld [vmem:[#allocation5 + $0x188] sm:$0xff]
    %v96 = vld [vmem:[#allocation5 + $0x190] sm:$0xff]
    %v97 = vld [vmem:[#allocation5 + $0x198] sm:$0xff]
    %v98 = vld [vmem:[#allocation5 + $0x1a0] sm:$0xff]
    %v99 = vld [vmem:[#allocation5 + $0x1a8] sm:$0xff]
    %v100 = vld [vmem:[#allocation5 + $0x1b0] sm:$0xff]
    %v101 = vld [vmem:[#allocation5 + $0x1b8] sm:$0xff]
    %v102 = vld [vmem:[#allocation5 + $0x1c0] sm:$0xff]
    %v103 = vld [vmem:[#allocation5 + $0x1c8] sm:$0xff]
    %v104 = vld [vmem:[#allocation5 + $0x1d0] sm:$0xff]
    %v105 = vld [vmem:[#allocation5 + $0x1d8] sm:$0xff]
    %v106 = vld [vmem:[#allocation5 + $0x1e0] sm:$0xff]
    %v107 = vld [vmem:[#allocation5 + $0x1e8] sm:$0xff]
    %v108 = vld [vmem:[#allocation5 + $0x1f0] sm:$0xff]
    %v109 = vld [vmem:[#allocation5 + $0x1f8] sm:$0xff]
    %v110 = vld [vmem:[%s2] sm:$0xff]
    %v111 = vld [vmem:[%s3] sm:$0xff]
    %v112 = vld [vmem:[%s3 + $0x8] sm:$0xff]
    %v113 = vld [vmem:[#allocation2] sm:$0xff]
    %v115 = vcombine.high %v113, %v113
    %117 = vmatprep.subr.mxu0 %v77
    %118 = vmatpush1.msra.mxu0 %v76
    %119 = vmatprep.subr.mxu0 %v75
    %120 = vmatpush1.msra.mxu0 %v74
    %121 = vmatprep.subr.mxu0 %v73
    %122 = vmatpush1.msra.mxu0 %v72
    %123 = vmatprep.subr.mxu0 %v71
    %124 = vmatpush1.msra.mxu0 %v70
    %125 = vmatprep.subr.mxu0 %v69
    %126 = vmatpush1.msra.mxu0 %v68
    %127 = vmatprep.subr.mxu0 %v67
    %128 = vmatpush1.msra.mxu0 %v66
    %129 = vmatprep.subr.mxu0 %v65
    %130 = vmatpush1.msra.mxu0 %v64
    %131 = vmatprep.subr.mxu0 %v63
    %132 = vmatpush1.msra.mxu0 %v62
    %133 = vmatprep.subr.mxu0 %v61
    %134 = vmatpush1.msra.mxu0 %v60
    %135 = vmatprep.subr.mxu0 %v59
    %136 = vmatpush1.msra.mxu0 %v58
    %137 = vmatprep.subr.mxu0 %v57
    %138 = vmatpush1.msra.mxu0 %v56
    %139 = vmatprep.subr.mxu0 %v55
    %140 = vmatpush1.msra.mxu0 %v54
    %141 = vmatprep.subr.mxu0 %v53
    %142 = vmatpush1.msra.mxu0 %v52
    %143 = vmatprep.subr.mxu0 %v51
    %144 = vmatpush1.msra.mxu0 %v50
    %145 = vmatprep.subr.mxu0 %v49
    %146 = vmatpush1.msra.mxu0 %v48
    %147 = vmatprep.subr.mxu0 %v47
    %148 = vmatpush1.msra.mxu0 %v46
    %149 = vmatprep.subr.mxu0 %v109
    %150 = vmatpush2.msra.mxu0 %v108
    %151 = vmatprep.subr.mxu0 %v107
    %152 = vmatpush2.msra.mxu0 %v106
    %153 = vmatprep.subr.mxu0 %v105
    %154 = vmatpush2.msra.mxu0 %v104
    %155 = vmatprep.subr.mxu0 %v103
    %156 = vmatpush2.msra.mxu0 %v102
    %157 = vmatprep.subr.mxu0 %v101
    %158 = vmatpush2.msra.mxu0 %v100
    %159 = vmatprep.subr.mxu0 %v99
    %160 = vmatpush2.msra.mxu0 %v98
    %161 = vmatprep.subr.mxu0 %v97
    %162 = vmatpush2.msra.mxu0 %v96
    %163 = vmatprep.subr.mxu0 %v95
    %164 = vmatpush2.msra.mxu0 %v94
    %165 = vmatprep.subr.mxu0 %v93
    %166 = vmatpush2.msra.mxu0 %v92
    %167 = vmatprep.subr.mxu0 %v91
    %168 = vmatpush2.msra.mxu0 %v90
    %169 = vmatprep.subr.mxu0 %v89
    %170 = vmatpush2.msra.mxu0 %v88
    %171 = vmatprep.subr.mxu0 %v87
    %172 = vmatpush2.msra.mxu0 %v86
    %173 = vmatprep.subr.mxu0 %v85
    %174 = vmatpush2.msra.mxu0 %v84
    %175 = vmatprep.subr.mxu0 %v83
    %176 = vmatpush2.msra.mxu0 %v82
    %177 = vmatprep.subr.mxu0 %v81
    %178 = vmatpush2.msra.mxu0 %v80
    %179 = vmatprep.subr.mxu0 %v79
    %180 = vmatpush2.msra.mxu0 %v78
    %181 = vmatprep.mubr.f32.mxu0 %v115
    %182 = vmatmul.mubr.f32.gmra.mxu0 %v113
    %v183 = vpop.f32.mrf.mxu0
    %v184 = vadd.f32 0.0, %v183
    %v185 = vpop.f32.mrf.mxu0
    %v186 = vadd.f32 0.0, %v185
    %187 = vdwg.mxu0
    %vm188 = vcmask 31744
    %v190 = vsel %vm188, %v110, 0
    %vm192 = vcmask 1043456
    %v194 = vsel %vm192, %v184, 0
    %v197 = vsel %vm192, %v186, 0
    %199 = vmatprep.subr.mxu0 0.0
    %200 = vmatpush1.msra.mxu0 0.0
    %201 = vmatprep.subr.mxu0 0.0
    %202 = vmatpush1.msra.mxu0 0.0
    %203 = vmatprep.subr.mxu0 0.0
    %204 = vmatpush1.msra.mxu0 0.0
    %205 = vmatprep.subr.mxu0 0.0
    %206 = vmatpush1.msra.mxu0 0.0
    %207 = vmatprep.subr.mxu0 0.0
    %208 = vmatpush1.msra.mxu0 0.0
    %209 = vmatprep.subr.mxu0 0.0
    %210 = vmatpush1.msra.mxu0 0.0
    %211 = vmatprep.subr.mxu0 0.0
    %212 = vmatpush1.msra.mxu0 0.0
    %213 = vmatprep.subr.mxu0 0.0
    %214 = vmatpush1.msra.mxu0 0.0
    %215 = vmatprep.subr.mxu0 0.0
    %216 = vmatpush1.msra.mxu0 0.0
    %217 = vmatprep.subr.mxu0 0.0
    %218 = vmatpush1.msra.mxu0 0.0
    %219 = vmatprep.subr.mxu0 0.0
    %220 = vmatpush1.msra.mxu0 0.0
    %221 = vmatprep.subr.mxu0 0.0
    %222 = vmatpush1.msra.mxu0 0.0
    %223 = vmatprep.subr.mxu0 0.0
    %224 = vmatpush1.msra.mxu0 0.0
    %225 = vmatprep.subr.mxu0 0.0
    %226 = vmatpush1.msra.mxu0 0.0
    %227 = vmatprep.subr.mxu0 0.0
    %228 = vmatpush1.msra.mxu0 0.0
    %229 = vmatprep.subr.mxu0 %v197
    %230 = vmatpush1.msra.mxu0 %v194
    %231 = vmatprep.subr.mxu0 0.0
    %232 = vmatpush2.msra.mxu0 0.0
    %233 = vmatprep.subr.mxu0 0.0
    %234 = vmatpush2.msra.mxu0 0.0
    %235 = vmatprep.subr.mxu0 0.0
    %236 = vmatpush2.msra.mxu0 0.0
    %237 = vmatprep.subr.mxu0 0.0
    %238 = vmatpush2.msra.mxu0 0.0
    %239 = vmatprep.subr.mxu0 0.0
    %240 = vmatpush2.msra.mxu0 0.0
    %241 = vmatprep.subr.mxu0 0.0
    %242 = vmatpush2.msra.mxu0 0.0
    %243 = vmatprep.subr.mxu0 0.0
    %244 = vmatpush2.msra.mxu0 0.0
    %245 = vmatprep.subr.mxu0 0.0
    %246 = vmatpush2.msra.mxu0 0.0
    %247 = vmatprep.subr.mxu0 0.0
    %248 = vmatpush2.msra.mxu0 0.0
    %249 = vmatprep.subr.mxu0 0.0
    %250 = vmatpush2.msra.mxu0 0.0
    %251 = vmatprep.subr.mxu0 0.0
    %252 = vmatpush2.msra.mxu0 0.0
    %253 = vmatprep.subr.mxu0 0.0
    %254 = vmatpush2.msra.mxu0 0.0
    %255 = vmatprep.subr.mxu0 0.0
    %256 = vmatpush2.msra.mxu0 0.0
    %257 = vmatprep.subr.mxu0 0.0
    %258 = vmatpush2.msra.mxu0 0.0
    %259 = vmatprep.subr.mxu0 0.0
    %260 = vmatpush2.msra.mxu0 0.0
    %261 = vmatprep.subr.mxu0 0.0
    %262 = vmatpush2.msra.mxu0 0.0
    %263 = vmatprep.mubr.f32.mxu0 0.0
    %264 = vmatmul.mubr.f32.gmra.mxu0 %v190
    %v265 = vpop.f32.mrf.mxu0
    %v266 = vadd.f32 %v111, %v265
    %v267 = vpop.f32.mrf.mxu0
    %v268 = vadd.f32 %v112, %v267
    %269 = vdwg.mxu0
    %270 = vst [vmem:[#allocation7] sm:$0xff] %v266
    %271 = vst [vmem:[#allocation7 + $0x8] sm:$0xff] %v268
    %s272 = scalar_lea.vmem [#allocation2], 8
    %v273 = vld [vmem:[%s272] sm:$0xff]
    %v275 = vcombine.high %v273, %v273
    %277 = vmatprep.subr.mxu0 %v77
    %278 = vmatpush1.msra.mxu0 %v76
    %279 = vmatprep.subr.mxu0 %v75
    %280 = vmatpush1.msra.mxu0 %v74
    %281 = vmatprep.subr.mxu0 %v73
    %282 = vmatpush1.msra.mxu0 %v72
    %283 = vmatprep.subr.mxu0 %v71
    %284 = vmatpush1.msra.mxu0 %v70
    %285 = vmatprep.subr.mxu0 %v69
    %286 = vmatpush1.msra.mxu0 %v68
    %287 = vmatprep.subr.mxu0 %v67
    %288 = vmatpush1.msra.mxu0 %v66
    %289 = vmatprep.subr.mxu0 %v65
    %290 = vmatpush1.msra.mxu0 %v64
    %291 = vmatprep.subr.mxu0 %v63
    %292 = vmatpush1.msra.mxu0 %v62
    %293 = vmatprep.subr.mxu0 %v61
    %294 = vmatpush1.msra.mxu0 %v60
    %295 = vmatprep.subr.mxu0 %v59
    %296 = vmatpush1.msra.mxu0 %v58
    %297 = vmatprep.subr.mxu0 %v57
    %298 = vmatpush1.msra.mxu0 %v56
    %299 = vmatprep.subr.mxu0 %v55
    %300 = vmatpush1.msra.mxu0 %v54
    %301 = vmatprep.subr.mxu0 %v53
    %302 = vmatpush1.msra.mxu0 %v52
    %303 = vmatprep.subr.mxu0 %v51
    %304 = vmatpush1.msra.mxu0 %v50
    %305 = vmatprep.subr.mxu0 %v49
    %306 = vmatpush1.msra.mxu0 %v48
    %307 = vmatprep.subr.mxu0 %v47
    %308 = vmatpush1.msra.mxu0 %v46
    %309 = vmatprep.subr.mxu0 %v109
    %310 = vmatpush2.msra.mxu0 %v108
    %311 = vmatprep.subr.mxu0 %v107
    %312 = vmatpush2.msra.mxu0 %v106
    %313 = vmatprep.subr.mxu0 %v105
    %314 = vmatpush2.msra.mxu0 %v104
    %315 = vmatprep.subr.mxu0 %v103
    %316 = vmatpush2.msra.mxu0 %v102
    %317 = vmatprep.subr.mxu0 %v101
    %318 = vmatpush2.msra.mxu0 %v100
    %319 = vmatprep.subr.mxu0 %v99
    %320 = vmatpush2.msra.mxu0 %v98
    %321 = vmatprep.subr.mxu0 %v97
    %322 = vmatpush2.msra.mxu0 %v96
    %323 = vmatprep.subr.mxu0 %v95
    %324 = vmatpush2.msra.mxu0 %v94
    %325 = vmatprep.subr.mxu0 %v93
    %326 = vmatpush2.msra.mxu0 %v92
    %327 = vmatprep.subr.mxu0 %v91
    %328 = vmatpush2.msra.mxu0 %v90
    %329 = vmatprep.subr.mxu0 %v89
    %330 = vmatpush2.msra.mxu0 %v88
    %331 = vmatprep.subr.mxu0 %v87
    %332 = vmatpush2.msra.mxu0 %v86
    %333 = vmatprep.subr.mxu0 %v85
    %334 = vmatpush2.msra.mxu0 %v84
    %335 = vmatprep.subr.mxu0 %v83
    %336 = vmatpush2.msra.mxu0 %v82
    %337 = vmatprep.subr.mxu0 %v81
    %338 = vmatpush2.msra.mxu0 %v80
    %339 = vmatprep.subr.mxu0 %v79
    %340 = vmatpush2.msra.mxu0 %v78
    %341 = vmatprep.mubr.f32.mxu0 %v275
    %342 = vmatmul.mubr.f32.gmra.mxu0 %v273
    %v343 = vpop.f32.mrf.mxu0
    %v344 = vadd.f32 0.0, %v343
    %v345 = vpop.f32.mrf.mxu0
    %v346 = vadd.f32 0.0, %v345
    %347 = vdwg.mxu0
    %v349 = vsel %vm192, %v344, 0
    %v352 = vsel %vm192, %v346, 0
    %354 = vmatprep.subr.mxu0 0.0
    %355 = vmatpush1.msra.mxu0 0.0
    %356 = vmatprep.subr.mxu0 0.0
    %357 = vmatpush1.msra.mxu0 0.0
    %358 = vmatprep.subr.mxu0 0.0
    %359 = vmatpush1.msra.mxu0 0.0
    %360 = vmatprep.subr.mxu0 0.0
    %361 = vmatpush1.msra.mxu0 0.0
    %362 = vmatprep.subr.mxu0 0.0
    %363 = vmatpush1.msra.mxu0 0.0
    %364 = vmatprep.subr.mxu0 0.0
    %365 = vmatpush1.msra.mxu0 0.0
    %366 = vmatprep.subr.mxu0 0.0
    %367 = vmatpush1.msra.mxu0 0.0
    %368 = vmatprep.subr.mxu0 0.0
    %369 = vmatpush1.msra.mxu0 0.0
    %370 = vmatprep.subr.mxu0 0.0
    %371 = vmatpush1.msra.mxu0 0.0
    %372 = vmatprep.subr.mxu0 0.0
    %373 = vmatpush1.msra.mxu0 0.0
    %374 = vmatprep.subr.mxu0 0.0
    %375 = vmatpush1.msra.mxu0 0.0
    %376 = vmatprep.subr.mxu0 0.0
    %377 = vmatpush1.msra.mxu0 0.0
    %378 = vmatprep.subr.mxu0 0.0
    %379 = vmatpush1.msra.mxu0 0.0
    %380 = vmatprep.subr.mxu0 0.0
    %381 = vmatpush1.msra.mxu0 0.0
    %382 = vmatprep.subr.mxu0 0.0
    %383 = vmatpush1.msra.mxu0 0.0
    %384 = vmatprep.subr.mxu0 %v352
    %385 = vmatpush1.msra.mxu0 %v349
    %386 = vmatprep.subr.mxu0 0.0
    %387 = vmatpush2.msra.mxu0 0.0
    %388 = vmatprep.subr.mxu0 0.0
    %389 = vmatpush2.msra.mxu0 0.0
    %390 = vmatprep.subr.mxu0 0.0
    %391 = vmatpush2.msra.mxu0 0.0
    %392 = vmatprep.subr.mxu0 0.0
    %393 = vmatpush2.msra.mxu0 0.0
    %394 = vmatprep.subr.mxu0 0.0
    %395 = vmatpush2.msra.mxu0 0.0
    %396 = vmatprep.subr.mxu0 0.0
    %397 = vmatpush2.msra.mxu0 0.0
    %398 = vmatprep.subr.mxu0 0.0
    %399 = vmatpush2.msra.mxu0 0.0
    %400 = vmatprep.subr.mxu0 0.0
    %401 = vmatpush2.msra.mxu0 0.0
    %402 = vmatprep.subr.mxu0 0.0
    %403 = vmatpush2.msra.mxu0 0.0
    %404 = vmatprep.subr.mxu0 0.0
    %405 = vmatpush2.msra.mxu0 0.0
    %406 = vmatprep.subr.mxu0 0.0
    %407 = vmatpush2.msra.mxu0 0.0
    %408 = vmatprep.subr.mxu0 0.0
    %409 = vmatpush2.msra.mxu0 0.0
    %410 = vmatprep.subr.mxu0 0.0
    %411 = vmatpush2.msra.mxu0 0.0
    %412 = vmatprep.subr.mxu0 0.0
    %413 = vmatpush2.msra.mxu0 0.0
    %414 = vmatprep.subr.mxu0 0.0
    %415 = vmatpush2.msra.mxu0 0.0
    %416 = vmatprep.subr.mxu0 0.0
    %417 = vmatpush2.msra.mxu0 0.0
    %418 = vmatprep.mubr.f32.mxu0 0.0
    %419 = vmatmul.mubr.f32.gmra.mxu0 %v190
    %v420 = vpop.f32.mrf.mxu0
    %v421 = vadd.f32 %v111, %v420
    %v422 = vpop.f32.mrf.mxu0
    %v423 = vadd.f32 %v112, %v422
    %424 = vdwg.mxu0
    %s425 = scalar_lea.vmem [#allocation7], 16
    %426 = vst [vmem:[%s425] sm:$0xff] %v421
    %427 = vst [vmem:[%s425 + $0x8] sm:$0xff] %v423
    // Predicated region
    $region26: #{tpu_custom_call.1} parent=1 // pred_check
      _
    $region27: #{tpu_custom_call.1} parent=1 // pred_check_branch
      %429 = sbr.rel (0) target = $region29
    $region28: #{tpu_custom_call.1} parent=1 // pred_region
      %s431 = ssub.s32 512, 512
      %432 = vsyncadd [#allocation4], %s431
      %s433 = sshll.u32 [#allocation7], 4
      %s434 = int_to_ptr.vmem [resolvable:$true] %s433
      %439 = dma.vmem_to_hbm [thread:$0]  %s434, 512, %s4, [#allocation4], 256, 256, 16
    $region29: #{tpu_custom_call.1} parent=1 // pred_fallthru
      _
    // Predicated region
    $region30: #{tpu_custom_call.1} parent=1 // pred_check
      _
    $region31: #{tpu_custom_call.1} parent=1 // pred_check_branch
      %441 = sbr.rel (0) target = $region33
    $region32: #{tpu_custom_call.1} parent=1 // pred_region
      %442 = dma.done [#allocation4], 512
    $region33: #{tpu_custom_call.1} parent=1 // pred_fallthru
      _
    %443 = vsyncpa [#allocation3], 1
    %444 = vsyncpa [#allocation6], 1
    %445 = vsyncpa [#allocation4], 1

</llo_original>
